<compile_context>
chip_gen: v7x
topology: tpu7x:2x2x1
jax: 0.10.0
libtpu: 0.0.40
codegen_flags: <defaults>
</compile_context>

<pallas_src>
import functools

import jax
import jax.numpy as jnp
from jax.experimental import pallas as pl
from jax.experimental.pallas import tpu as pltpu

LANE = 128


def _round_up(x, m):
    return ((x + m - 1) // m) * m


def _pick_hw_tile(hw, max_tile=512):
    """Largest sublane-aligned divisor of hw that is <= max_tile (or hw itself
    when small).  Only exact divisors are returned, so every grid step is a full
    tile and the GAP reduction needs no masking."""
    if hw <= max_tile:
        return hw
    for t in range(max_tile, 7, -1):
        if t % 8 == 0 and hw % t == 0:
            return t
    # No sublane-aligned divisor <= max_tile (awkward hw): fall back to the full
    # extent.  TODO(synk): a huge awkward hw would make this single tile exceed
    # the CAM-path VMEM budget; such shapes do not occur for stride-16 backbones.
    return hw


# ----------------------------------------------------------------------------
# Pallas kernels
# ----------------------------------------------------------------------------
def _gap_classifier_kernel(x_ref, w_ref, o_ref, acc_ref, *, cin, inv_hw):
    """Fused GAP + (backbone-proj . classifier) for the with_cam=False path.

    The stand-in backbone head is a bias-free *linear* 1x1 projection, so GAP
    commutes with it: we only accumulate sum(x) over HW and apply the pre-fused
    (Cin, K1_pad) weight once at the end.

    Grid = (B, HW_tiles); HW is the trailing 'arbitrary' reduction axis.
    x_ref   : (t_hw, cin)    pooled input tile (b squeezed)
    w_ref   : (cin, K1_pad)  f32 pre-fused weight (backbone_w @ classifier_w)
    o_ref   : (1, K1_pad)    f32 logits for this b (written at the last HW step)
    acc_ref : (1, cin)       f32 VMEM scratch (running sum of x over HW)
    """
    m = pl.program_id(1)

    @pl.when(m == 0)
    def _():
        acc_ref[...] = jnp.zeros_like(acc_ref)

    # Partial global-average-pool on the *input*: tiny XLU sublane reduce.
    acc_ref[...] += jnp.sum(x_ref[...].astype(jnp.float32), axis=0, keepdims=True)

    @pl.when(m == pl.num_programs(1) - 1)
    def _():
        # Dropout2d(0.5) is identity at inference; classifier 1x1 conv == matmul.
        gap = acc_ref[...] * inv_hw                  # (1, cin) f32
        w = w_ref[...]                               # (cin, K1_pad) f32
        # K = cin = 3: VPU broadcast FMAs — the MXU would be nearly empty.
        out = gap[:, 0:1] * w[0:1, :]
        for k in range(1, cin):
            out = out + gap[:, k:k + 1] * w[k:k + 1, :]
        o_ref[...] = out.astype(o_ref.dtype)


def _fused_cam_kernel(x_ref, bbw_ref, clsw_ref, s5_ref, cam_ref, *, cin):
    """Fused backbone 1x1 conv + per-pixel classifier (CAM) for one (b, hw) tile.

    x_ref   : (t_hw, cin)      pooled input tile
    bbw_ref : (cin, C)         bf16 backbone weight
    clsw_ref: (C, K1_pad)      bf16 classifier weight (lane-padded to 128)
    s5_ref  : (t_hw, C)        bf16 stage5 features out (half HBM writeback/VMEM)
    cam_ref : (t_hw, K1_pad)   f32 CAM logits out
    """
    x = x_ref[...].astype(jnp.float32)               # (t_hw, cin)
    w = bbw_ref[...].astype(jnp.float32)             # (cin, C)
    # K=3 projection as VPU broadcast FMAs (f32 accumulation).
    s5 = x[:, 0:1] * w[0:1, :]
    for k in range(1, cin):
        s5 = s5 + x[:, k:k + 1] * w[k:k + 1, :]      # (t_hw, C) f32
    s5_bf16 = s5.astype(jnp.bfloat16)                # single cast, reused twice
    s5_ref[...] = s5_bf16
    cam_ref[...] = jnp.dot(s5_bf16, clsw_ref[...],
                           preferred_element_type=jnp.float32)


# ----------------------------------------------------------------------------
# Module wrapper
# ----------------------------------------------------------------------------
class BaseClassifierPallas:
    def __init__(self, model_name="resnet50", num_classes=20,
                 strides=(2, 2, 2, 1), key=None):
        if key is None:
            key = jax.random.PRNGKey(0)
        self.num_classes = num_classes
        if "38" in model_name:
            self.num_features = [128, 256, 512, 1024, 4096]
        else:
            self.num_features = [64, 256, 512, 1024, 2048]
        self.c_feat = self.num_features[-1]
        self.c_in = 3
        self.k1 = num_classes + 1
        self.k1_pad = _round_up(self.k1, LANE)   # lane-dense classifier N dim

        k_bb, k_cls = jax.random.split(key)
        # TODO(synk): ReturnLastLayerBaseBackbone is an external full ResNet; stood in
        # with a stride-16 average pool + learned 1x1 projection to num_features[-1].
        self.backbone_stride = 16  # stem(2) * maxpool(2) * strides (2,2,2,1) overall
        self.backbone_w = (0.5 * jax.random.normal(
            k_bb, (self.c_in, self.c_feat))).astype(jnp.bfloat16)

        # classifier = Dropout2d(0.5) + Conv2d(c_feat, K+1, 1, bias=False).
        # Conv weight (K+1, C, 1, 1) stored transposed as (C, K+1), zero-padded to
        # (C, 128) so the matmul N dim / stores are lane-dense.
        w_cls = (0.1 * jax.random.normal(k_cls, (self.c_feat, self.k1))
                 ).astype(jnp.bfloat16)
        self.classifier_w = jnp.zeros((self.c_feat, self.k1_pad),
                                      jnp.bfloat16).at[:, :self.k1].set(w_cls)

        # Pre-fused weight for the GAP path: because the stand-in backbone head is
        # linear & bias-free it commutes with the GAP, so logits = mean(x) @ W with
        # W = backbone_w @ classifier_w   (computed once, (Cin, K1_pad) f32).
        self.fused_gap_w = jnp.dot(self.backbone_w.astype(jnp.float32),
                                   self.classifier_w.astype(jnp.float32),
                                   precision=jax.lax.Precision.HIGHEST)

    # -- stand-in backbone front end (tiny; plain-JAX glue) -------------------
    def _pooled_input(self, x_nchw):
        B, Cin, H, W = x_nchw.shape
        s = self.backbone_stride
        assert H % s == 0 and W % s == 0, "H, W must be divisible by stride 16"
        x = jnp.transpose(x_nchw, (0, 2, 3, 1))                          # NCHW -> NHWC
        x = x.reshape(B, H // s, s, W // s, s, Cin).mean(axis=(2, 4))    # stride-16 avg pool
        h, w = H // s, W // s
        return x.reshape(B, h * w, Cin), h, w

    # -- forward --------------------------------------------------------------
    def __call__(self, x, with_cam=False):
        B = x.shape[0]
        pooled, h, w = self._pooled_input(x)       # (B, HW, Cin) -- small
        hw = h * w
        C, K1p, Cin = self.c_feat, self.k1_pad, self.c_in
        t_hw = _pick_hw_tile(hw)
        n_hw = hw // t_hw

        if with_cam:
            kern = functools.partial(_fused_cam_kernel, cin=Cin)
            stage5_flat, cam_flat = pl.pallas_call(
                kern,
                out_shape=(jax.ShapeDtypeStruct((B, hw, C), jnp.bfloat16),
                           jax.ShapeDtypeStruct((B, hw, K1p), jnp.float32)),
                grid=(B, n_hw),
                in_specs=[
                    pl.BlockSpec((None, t_hw, Cin), lambda b, m: (b, m, 0)),
                    pl.BlockSpec((Cin, C), lambda b, m: (0, 0)),
                    pl.BlockSpec((C, K1p), lambda b, m: (0, 0)),
                ],
                out_specs=(
                    pl.BlockSpec((None, t_hw, C), lambda b, m: (b, m, 0)),
                    pl.BlockSpec((None, t_hw, K1p), lambda b, m: (b, m, 0)),
                ),
                compiler_params=pltpu.CompilerParams(
                    dimension_semantics=("parallel", "parallel"),
                    vmem_limit_bytes=32 * 1024 * 1024,
                ),
            )(pooled, self.backbone_w, self.classifier_w)

            # stage5 kept in bf16 end-to-end (per perf review: halves HBM
            # writeback); CAM logits are f32 accumulations over the bf16 stage5.
            stage5 = jnp.transpose(stage5_flat.reshape(B, h, w, C), (0, 3, 1, 2))
            cam_logits = jnp.transpose(
                cam_flat[:, :, :self.k1].reshape(B, h, w, self.k1), (0, 3, 1, 2))
            return stage5, cam_logits

        kern = functools.partial(_gap_classifier_kernel, cin=Cin, inv_hw=1.0 / hw)
        logits_full = pl.pallas_call(
            kern,
            out_shape=jax.ShapeDtypeStruct((B, 1, K1p), jnp.float32),
            grid=(B, n_hw),   # HW reduction axis last
            in_specs=[
                pl.BlockSpec((None, t_hw, Cin), lambda b, m: (b, m, 0)),
                pl.BlockSpec((Cin, K1p), lambda b, m: (0, 0)),
            ],
            out_specs=pl.BlockSpec((None, 1, K1p), lambda b, m: (b, 0, 0)),
            scratch_shapes=[pltpu.VMEM((1, Cin), jnp.float32)],
            compiler_params=pltpu.CompilerParams(
                dimension_semantics=("parallel", "arbitrary"),
                vmem_limit_bytes=32 * 1024 * 1024,
            ),
        )(pooled, self.fused_gap_w)

        # TODO(synk): original `.view(B, num_classes)` on a (B, num_classes+1) tensor
        # would raise in PyTorch; return the first num_classes logits instead.
        return logits_full.reshape(B, K1p)[:, :self.num_classes]


# ----------------------------------------------------------------------------
# Demo
# ----------------------------------------------------------------------------
if __name__ == "__main__":
    key = jax.random.PRNGKey(0)
    k_model, k_x = jax.random.split(key)

    model = BaseClassifierPallas(model_name="resnet50", num_classes=20, key=k_model)

    # Small deterministic input, NCHW like the PyTorch module: (B=2, C=3, H=32, W=32)
    x = jax.random.normal(k_x, (2, 3, 32, 32), dtype=jnp.float32)

    # Path 1: classification logits (GAP-first fused kernel).
    logits = jax.block_until_ready(model(x, with_cam=False))
    assert logits.shape == (2, 20)

    # Path 2: with_cam=True returns (stage5, cam_logits), one fused kernel.
    stage5, cam_logits = model(x, with_cam=True)
    stage5 = jax.block_until_ready(stage5)
    cam_logits = jax.block_until_ready(cam_logits)
    assert stage5.shape == (2, 2048, 2, 2)
    assert cam_logits.shape == (2, 21, 2, 2)

    # Pure-JAX f32 reference for both paths.
    pooled_ref, h, w = model._pooled_input(x)                       # (B, hw, 3)
    bbw_f32 = model.backbone_w.astype(jnp.float32)
    clsw_f32 = model.classifier_w[:, :model.k1].astype(jnp.float32)
    hi = jax.lax.Precision.HIGHEST
    s5_flat_ref = jnp.einsum("bpc,cf->bpf", pooled_ref, bbw_f32, precision=hi)
    cam_flat_ref = jnp.einsum("bpf,fk->bpk", s5_flat_ref, clsw_f32, precision=hi)
    logits_ref = jnp.einsum("bf,fk->bk", s5_flat_ref.mean(axis=1), clsw_f32,
                            precision=hi)[:, :20]
    stage5_ref = jnp.transpose(s5_flat_ref.reshape(2, h, w, -1), (0, 3, 1, 2))
    cam_ref = jnp.transpose(cam_flat_ref.reshape(2, h, w, -1), (0, 3, 1, 2))

    assert jnp.allclose(logits, logits_ref, rtol=1e-2, atol=1e-3), "GAP logits mismatch"
    assert jnp.allclose(stage5.astype(jnp.float32), stage5_ref,
                        rtol=2e-2, atol=2e-3), "stage5 mismatch"
    assert jnp.allclose(cam_logits, cam_ref, rtol=2e-2, atol=1e-2), "CAM logits mismatch"

    # Cross-check: by linearity, GAP-path logits == spatial mean of CAM logits
    # (bf16 stage5 rounding tolerance).
    assert jnp.allclose(logits, cam_logits.mean(axis=(2, 3))[:, :20],
                        rtol=2e-2, atol=1e-2), "GAP vs CAM cross-check failed"

    print("KERNEL_OK")
</pallas_src>

<mosaic_0001>
module attributes {stable_mosaic.version = 11 : i64} {
  func.func @_gap_classifier_kernel(%arg0: i32, %arg1: i32, %arg2: memref<1x4x3xf32, #tpu.memory_space<vmem>>, %arg3: memref<3x128xf32, #tpu.memory_space<vmem>>, %arg4: memref<1x1x128xf32, #tpu.memory_space<vmem>>, %arg5: memref<1x3xf32, #tpu.memory_space<vmem>>) attributes {dimension_semantics = [#tpu.dimension_semantics<parallel>, #tpu.dimension_semantics<arbitrary>], iteration_bounds = array<i64: 2, 1>, scalar_prefetch = 0 : i64, scratch_operands = 1 : i64, tpu.core_type = #tpu.core_type<tc>, window_params = [{transform_indices = @transform_0, window_bounds = array<i64: 1, 4, 3>}, {pipeline_mode = #tpu.pipeline_mode<synchronous>, transform_indices = @transform_1, window_bounds = array<i64: 3, 128>}, {transform_indices = @transform_2, window_bounds = array<i64: 1, 1, 128>}]} {
    %c0_i32 = arith.constant 0 : i32
    %0 = arith.cmpi eq, %arg1, %c0_i32 : i32
    %1 = arith.extui %0 : i1 to i32
    %c0_i32_0 = arith.constant 0 : i32
    %2 = arith.cmpi ne, %1, %c0_i32_0 : i32
    scf.if %2 {
      %cst_9 = arith.constant 0.000000e+00 : f32
      %13 = vector.broadcast %cst_9 : f32 to vector<1x3xf32>
      %c0_10 = arith.constant 0 : index
      %c0_11 = arith.constant 0 : index
      %14 = vector.load %arg5[%c0_10, %c0_11] : memref<1x3xf32, #tpu.memory_space<vmem>>, vector<1x3xf32>
      tpu.vector_store %arg5[%c0_10, %c0_11], %13 {strides = array<i32>} : memref<1x3xf32, #tpu.memory_space<vmem>>, vector<1x3xf32>,
    } else {
    }
    %c0 = arith.constant 0 : index
    %c0_1 = arith.constant 0 : index
    %3 = vector.load %arg5[%c0, %c0_1] : memref<1x3xf32, #tpu.memory_space<vmem>>, vector<1x3xf32>
    %c0_2 = arith.constant 0 : index
    %c0_3 = arith.constant 0 : index
    %c0_4 = arith.constant 0 : index
    %4 = vector.load %arg2[%c0_2, %c0_3, %c0_4] : memref<1x4x3xf32, #tpu.memory_space<vmem>>, vector<1x4x3xf32>
    %5 = vector.shape_cast %4 : vector<1x4x3xf32> to vector<4x3xf32>
    %cst = arith.constant dense<0.000000e+00> : vector<3xf32>
    %6 = vector.multi_reduction <add>, %5, %cst [0] : vector<4x3xf32> to vector<3xf32>
    %7 = vector.shape_cast %6 : vector<3xf32> to vector<1x3xf32>
    %8 = arith.addf %3, %7 : vector<1x3xf32>
    %c0_5 = arith.constant 0 : index
    %c0_6 = arith.constant 0 : index
    %9 = vector.load %arg5[%c0_5, %c0_6] : memref<1x3xf32, #tpu.memory_space<vmem>>, vector<1x3xf32>
    tpu.vector_store %arg5[%c0_5, %c0_6], %8 {strides = array<i32>} : memref<1x3xf32, #tpu.memory_space<vmem>>, vector<1x3xf32>,
    %c0_i32_7 = arith.constant 0 : i32
    %10 = arith.cmpi eq, %arg1, %c0_i32_7 : i32
    %11 = arith.extui %10 : i1 to i32
    %c0_i32_8 = arith.constant 0 : i32
    %12 = arith.cmpi ne, %11, %c0_i32_8 : i32
    scf.if %12 {
      %c0_9 = arith.constant 0 : index
      %c0_10 = arith.constant 0 : index
      %13 = vector.load %arg5[%c0_9, %c0_10] : memref<1x3xf32, #tpu.memory_space<vmem>>, vector<1x3xf32>
      %cst_11 = arith.constant 2.500000e-01 : f32
      %14 = vector.broadcast %cst_11 : f32 to vector<1x3xf32>
      %15 = arith.mulf %13, %14 : vector<1x3xf32>
      %c0_12 = arith.constant 0 : index
      %c0_13 = arith.constant 0 : index
      %16 = vector.load %arg3[%c0_12, %c0_13] : memref<3x128xf32, #tpu.memory_space<vmem>>, vector<3x128xf32>
      %17 = vector.extract_strided_slice %15 {offsets = [0, 0], sizes = [1, 1], strides = [1, 1]} : vector<1x3xf32> to vector<1x1xf32>
      %18 = vector.extract_strided_slice %16 {offsets = [0, 0], sizes = [1, 128], strides = [1, 1]} : vector<3x128xf32> to vector<1x128xf32>
      %19 = vector.broadcast %17 : vector<1x1xf32> to vector<1x128xf32>
      %20 = arith.mulf %19, %18 : vector<1x128xf32>
      %21 = vector.extract_strided_slice %15 {offsets = [0, 1], sizes = [1, 1], strides = [1, 1]} : vector<1x3xf32> to vector<1x1xf32>
      %22 = vector.extract_strided_slice %16 {offsets = [1, 0], sizes = [1, 128], strides = [1, 1]} : vector<3x128xf32> to vector<1x128xf32>
      %23 = vector.broadcast %21 : vector<1x1xf32> to vector<1x128xf32>
      %24 = arith.mulf %23, %22 : vector<1x128xf32>
      %25 = arith.addf %20, %24 : vector<1x128xf32>
      %26 = vector.extract_strided_slice %15 {offsets = [0, 2], sizes = [1, 1], strides = [1, 1]} : vector<1x3xf32> to vector<1x1xf32>
      %27 = vector.extract_strided_slice %16 {offsets = [2, 0], sizes = [1, 128], strides = [1, 1]} : vector<3x128xf32> to vector<1x128xf32>
      %28 = vector.broadcast %26 : vector<1x1xf32> to vector<1x128xf32>
      %29 = arith.mulf %28, %27 : vector<1x128xf32>
      %30 = arith.addf %25, %29 : vector<1x128xf32>
      %c0_14 = arith.constant 0 : index
      %c0_15 = arith.constant 0 : index
      %c0_16 = arith.constant 0 : index
      %31 = vector.load %arg4[%c0_14, %c0_15, %c0_16] : memref<1x1x128xf32, #tpu.memory_space<vmem>>, vector<1x1x128xf32>
      %32 = vector.shape_cast %31 : vector<1x1x128xf32> to vector<1x128xf32>
      %33 = vector.shape_cast %30 : vector<1x128xf32> to vector<1x1x128xf32>
      tpu.vector_store %arg4[%c0_14, %c0_15, %c0_16], %33 {strides = array<i32>} : memref<1x1x128xf32, #tpu.memory_space<vmem>>, vector<1x1x128xf32>,
    } else {
    }
    return
  }
  func.func @transform_0(%arg0: i32, %arg1: i32) -> (i32, i32, i32) {
    %c0_i32 = arith.constant 0 : i32
    %c0_i32_0 = arith.constant 0 : i32
    return %arg0, %arg1, %c0_i32 : i32, i32, i32
  }
  func.func @transform_1(%arg0: i32, %arg1: i32) -> (i32, i32) {
    %c0_i32 = arith.constant 0 : i32
    %c0_i32_0 = arith.constant 0 : i32
    %c0_i32_1 = arith.constant 0 : i32
    return %c0_i32, %c0_i32_0 : i32, i32
  }
  func.func @transform_2(%arg0: i32, %arg1: i32) -> (i32, i32, i32) {
    %c0_i32 = arith.constant 0 : i32
    %c0_i32_0 = arith.constant 0 : i32
    %c0_i32_1 = arith.constant 0 : i32
    return %arg0, %c0_i32, %c0_i32_0 : i32, i32, i32
  }
}

</mosaic_0001>

<llo_original>
// kernel: tpu_custom_call.1
$region0: #{tpu_custom_call.1}
  #allocation0 [shape = 'u32[]', space=smem, size = 0x4, offset = 0x4, fixed_abs, tag = 'smem constant byte address 0x4 - core index']
  #allocation1 [shape = 'u32[144,128]{1,0:T(1,128)}', space=vmem, size = 0x12000, scoped, tag = 'internal scratch']
  #allocation2 [shape = 'f32[1,3]{1,0:T(1,128)}', space=vmem, size = 0x200, scoped, tag = 'scratch operand']
  %s0 = inlined_call_operand.vmem [shape: f32[2,4,3], index: 0, kind: input, shape index: {}]
  %s1 = inlined_call_operand.vmem [shape: f32[3,128], index: 1, kind: input, shape index: {}]
  %s2 = inlined_call_operand.hbm [shape: f32[2,1,128], index: 2, kind: output, shape index: {}]
  %s3 = sld [smem:[#allocation0]]
  $region49: #{tpu_custom_call.1} parent=0
    _
  %s5 = ssub.s32 1, %s3
  %s6 = scalar_select 0, %s5, %s3
  $region1: #{tpu_custom_call.1} parent=0
    #allocation3 [shape = 'u8[1024]{0}', space=vmem, size = 0x400, scoped, tag = 'output window, operand 0']
    #allocation4 [shape = 's32[2]{0}', space=sflag, size = 0x8, scoped, tag = 'scoped memory for tpu_custom_call.1']
    %7 = vsyncpa [#allocation4], 0
    %s8 = scalar_lea.sflag [#allocation4], 1
    %9 = vsyncpa %s8, 0
    loop: start=0, step=1, limit=4
    $region2: #{tpu_custom_call.1} parent=1 // loop_pre_header
      _
    $region3: #{tpu_custom_call.1} parent=1 // loop_header
      %s11 = sphi 0, %s15
      %p12 = scmp.ge.s32.totalorder %s11, 4
      %s18 = sphi 0, %s30
      %s19 = sphi 0, %s26
      %s20 = sphi 0, %s18
      %s21 = sphi 0, %s19
      %s22 = sphi 0, %s20
      %s23 = sphi 0, %s21
      %s35 = sphi 0, %s37
      %s38 = sphi 0, %s35
      %s39 = sphi 0, %s38
      %s55 = sphi 0, %s39
      %s59 = sphi 0, %s59
      %s61 = sphi 0, %s59
      %s62 = sphi 0, %s61
      %s76 = sphi 0, %s62
      %s82 = sphi 0, %s84
      %s85 = sphi 0, %s82
      %s86 = sphi 0, %s85
      %s102 = sphi 0, %s86
    $region4: #{tpu_custom_call.1} parent=1 // loop_header_branch
      %14 = sbr.rel (%p12) target = $region8
    $region5: #{tpu_custom_call.1} parent=1 // loop_body
      %s16 = ssub.s32 %s11, 1
      %s17 = ssub.s32 %s11, 2
      %s24 = sadd.s32 1, %s19
      %p25 = scmp.ge.s32.totalorder %s24, 1
      %s26 = scalar_select %p25, 0, %s24
      %s27 = sadd.s32 1, %s18
      %s28 = scalar_select %p25, %s27, %s18
      %p29 = scmp.ge.s32.totalorder %s28, 2
      %s30 = scalar_select %p29, 0, %s28
      %s31 = ssub.s32 %s18, %s30
      %s32 = ssub.s32 %s19, %s26
      %s33 = sor.u32 %s31, %s32
      %p34 = scmp.eq.s32.totalorder %s33, 0
      %s36 = sadd.s32 %s35, 1
      %s37 = scalar_select %p34, %s35, %s36
      %p40 = pneg %p34
      %p41 = scmp.eq.s32.totalorder %s11, 1
      %p42 = por %p40, %p41
      %p43 = scmp.ne.s32.totalorder %s35, %s38
      %p44 = scmp.eq.s32.totalorder %s11, 0
      %p45 = por %p43, %p44
      %p46 = scmp.ne.s32.totalorder %s35, %s38
      %p47 = scmp.eq.s32.totalorder %s16, 1
      %p48 = por %p46, %p47
      %p49 = scmp.ne.s32.totalorder %s38, %s39
      %p50 = scmp.eq.s32.totalorder %s16, 0
      %p51 = por %p49, %p50
      %p52 = scmp.ne.s32.totalorder %s38, %s39
      %p53 = scmp.eq.s32.totalorder %s17, 1
      %p54 = por %p52, %p53
      %p56 = scmp.ne.s32.totalorder %s39, %s55
      %p57 = scmp.eq.s32.totalorder %s17, 0
      %p58 = por %p56, %p57
      %s60 = sadd.s32 %s59, 1
      %p63 = scmp.eq.s32.totalorder %s11, 1
      %p64 = scmp.ne.s32.totalorder %s59, %s61
      %p65 = scmp.eq.s32.totalorder %s11, 0
      %p66 = por %p64, %p65
      %p67 = scmp.ne.s32.totalorder %s59, %s61
      %p68 = scmp.eq.s32.totalorder %s16, 1
      %p69 = por %p67, %p68
      %p70 = scmp.ne.s32.totalorder %s61, %s62
      %p71 = scmp.eq.s32.totalorder %s16, 0
      %p72 = por %p70, %p71
      %p73 = scmp.ne.s32.totalorder %s61, %s62
      %p74 = scmp.eq.s32.totalorder %s17, 1
      %p75 = por %p73, %p74
      %p77 = scmp.ne.s32.totalorder %s62, %s76
      %p78 = scmp.eq.s32.totalorder %s17, 0
      %p79 = por %p77, %p78
      %s80 = ssub.s32 %s18, %s30
      %p81 = scmp.eq.s32.totalorder %s80, 0
      %s83 = sadd.s32 %s82, 1
      %s84 = scalar_select %p81, %s82, %s83
      %p87 = pneg %p81
      %p88 = scmp.eq.s32.totalorder %s11, 1
      %p89 = por %p87, %p88
      %p90 = scmp.ne.s32.totalorder %s82, %s85
      %p91 = scmp.eq.s32.totalorder %s11, 0
      %p92 = por %p90, %p91
      %p93 = scmp.ne.s32.totalorder %s82, %s85
      %p94 = scmp.eq.s32.totalorder %s16, 1
      %p95 = por %p93, %p94
      %p96 = scmp.ne.s32.totalorder %s85, %s86
      %p97 = scmp.eq.s32.totalorder %s16, 0
      %p98 = por %p96, %p97
      %p99 = scmp.ne.s32.totalorder %s85, %s86
      %p100 = scmp.eq.s32.totalorder %s17, 1
      %p101 = por %p99, %p100
      %p103 = scmp.ne.s32.totalorder %s86, %s102
      %p104 = scmp.eq.s32.totalorder %s17, 0
      %p105 = por %p103, %p104
      %p106 = scmp.le.s32.totalorder 1, %s11
      %p107 = scmp.lt.s32.totalorder %s11, 3
      %p108 = pnand %p106, %p107
      %p109 = pneg %p108
      // Predicated region
      $region9: #{tpu_custom_call.1} parent=5 // pred_check
        _
      $region10: #{tpu_custom_call.1} parent=5 // pred_check_branch
        %111 = sbr.rel (%p108) target = $region12
      $region11: #{tpu_custom_call.1} parent=5 // pred_region
        %s112 = ssub.s32 %s11, 1
        // Predicated region
        $region13: #{tpu_custom_call.1} parent=11 // pred_check
          %p113 = pneg %p72
        $region14: #{tpu_custom_call.1} parent=11 // pred_check_branch
          %115 = sbr.rel (%p113) target = $region16
        $region15: #{tpu_custom_call.1} parent=11 // pred_region
          _
        $region16: #{tpu_custom_call.1} parent=11 // pred_fallthru
          _
      $region12: #{tpu_custom_call.1} parent=5 // pred_fallthru
        _
      %p116 = scmp.lt.s32.totalorder %s11, 2
      // Predicated region
      $region17: #{tpu_custom_call.1} parent=5 // pred_check
        %p117 = pneg %p116
      $region18: #{tpu_custom_call.1} parent=5 // pred_check_branch
        %119 = sbr.rel (%p117) target = $region20
      $region19: #{tpu_custom_call.1} parent=5 // pred_region
        // Predicated region
        $region21: #{tpu_custom_call.1} parent=19 // pred_check
          %p120 = pneg %p45
        $region22: #{tpu_custom_call.1} parent=19 // pred_check_branch
          %122 = sbr.rel (%p120) target = $region24
        $region23: #{tpu_custom_call.1} parent=19 // pred_region
          %p123 = scmp.lt.s32.totalorder %s18, 1
          %s124 = scalar_select %p123, %s18, 1
          %p125 = scmp.lt.s32.totalorder %s19, 0
          %s126 = scalar_select %p125, %s19, 0
          %s127 = sadd.s32 %s126, %s124
          %s128 = smul.addr %s127, 4
          %s129 = scalar_lea.vmem %s0, %s128
        $region24: #{tpu_custom_call.1} parent=19 // pred_fallthru
          _
      $region20: #{tpu_custom_call.1} parent=5 // pred_fallthru
        _
      %p130 = scmp.le.s32.totalorder 1, %s11
      %p131 = scmp.lt.s32.totalorder %s11, 3
      %p132 = pnand %p130, %p131
      %p133 = pneg %p132
      // Predicated region
      $region25: #{tpu_custom_call.1} parent=5 // pred_check
        _
      $region26: #{tpu_custom_call.1} parent=5 // pred_check_branch
        %135 = sbr.rel (%p132) target = $region28
      $region27: #{tpu_custom_call.1} parent=5 // pred_region
        %s136 = ssub.s32 %s11, 1
        %p137 = scmp.lt.s32.totalorder %s20, 1
        %s138 = scalar_select %p137, %s20, 1
        %p139 = scmp.lt.s32.totalorder %s21, 0
        %s140 = scalar_select %p139, %s21, 0
        %s141 = sadd.s32 %s140, %s138
        %s142 = smul.addr %s141, 4
        %s143 = scalar_lea.vmem %s0, %s142
        %p144 = pneg %p51
        %p145 = pneg %p48
        %p146 = pneg %p72
        %p147 = pneg %p69
        %p148 = pneg %p98
        %p149 = pneg %p95
        %s150 = sand.u32 %s85, 1
        %s151 = scalar_lea.sflag [#allocation4], %s150
        %s152 = sand.u32 %s85, 1
        %s153 = scalar_lea.vmem [#allocation3], %s152
        %p154 = scmp.lt.s32.totalorder %s20, 1
        %s155 = scalar_select %p154, %s20, 1
        %p156 = scmp.lt.s32.totalorder %s21, 0
        %s157 = scalar_select %p156, %s21, 0
        %s158 = sadd.s32 %s157, %s155
        %s159 = smul.addr %s158, 4
        %s160 = scalar_lea.vmem %s0, %s159
        %p161 = scmp.eq.s32.totalorder %s21, 0
        // Predicated region
        $region29: #{tpu_custom_call.1} parent=27 // pred_check
          %p162 = pneg %p161
        $region30: #{tpu_custom_call.1} parent=27 // pred_check_branch
          %164 = sbr.rel (%p162) target = $region32
        $region31: #{tpu_custom_call.1} parent=27 // pred_region
          %vm165 = vcmask 16384
          %166 = vst.msk [vmem:[#allocation2] sm:$0x1] %vm165, 0.0
        $region32: #{tpu_custom_call.1} parent=27 // pred_fallthru
          _
        %v167 = vld [vmem:[#allocation2] sm:$0x1]
        %v168 = vld [vmem:[%s160] sm:$0xf]
        %vm169 = vcmask 19456
        %v170 = vsel %vm169, %v168, 0.0
        %v171 = vrot.slane %v170, 4
        %v172 = vadd.f32 %v170, %v171
        %v173 = vrot.slane %v172, 2
        %v174 = vadd.f32 %v172, %v173
        %v175 = vrot.slane %v174, 1
        %v176 = vadd.f32 %v174, %v175
        %v177 = vadd.f32 %v167, %v176
        %vm178 = vcmask 16384
        %179 = vst.msk [vmem:[#allocation2] sm:$0x1] %vm178, %v177
        // Predicated region
        $region33: #{tpu_custom_call.1} parent=27 // pred_check
          %p180 = pneg %p161
        $region34: #{tpu_custom_call.1} parent=27 // pred_check_branch
          %182 = sbr.rel (%p180) target = $region36
        $region35: #{tpu_custom_call.1} parent=27 // pred_region
          %v183 = vld [vmem:[#allocation2] sm:$0x1]
          %v184 = vmul.f32 %v183, 0.25
          %v185 = vld [vmem:[%s1] sm:$0x7]
          %187 = vset.pattern.permute.xlu0 0
          %188 = vperm.xlu0 %187, %v184
          %v189 = vpop.permute.xlu0 %188
          %v191 = vlaneseq
          %v192 = vshrl.u32 %v191, 7
          %v193 = vsub.s32 0, %v192
          %v194 = vrot.slane %v189, %v193
          %v195 = vmul.f32 %v194, %v185
          %196 = vset.pattern.permute.xlu0 1
          %197 = vperm.xlu0 %196, %v184
          %v198 = vpop.permute.xlu0 %197
          %v200 = vlaneseq
          %v201 = vshrl.u32 %v200, 7
          %v202 = vsub.s32 0, %v201
          %v203 = vrot.slane %v198, %v202
          %v204 = vmul.f32 %v203, %v185
          %v206 = vrot.slane %v204, 1
          %v208 = vadd.f32 %v195, %v206
          %209 = vset.pattern.permute.xlu0 2
          %210 = vperm.xlu0 %209, %v184
          %v211 = vpop.permute.xlu0 %210
          %v213 = vlaneseq
          %v214 = vshrl.u32 %v213, 7
          %v215 = vsub.s32 0, %v214
          %v216 = vrot.slane %v211, %v215
          %v217 = vmul.f32 %v216, %v185
          %v219 = vrot.slane %v217, 2
          %v221 = vadd.f32 %v208, %v219
          %222 = vst [vmem:[%s153] sm:$0x1] %v221
        $region36: #{tpu_custom_call.1} parent=27 // pred_fallthru
          _
        %s223 = sand.u32 %s85, 1
        %s224 = scalar_lea.sflag [#allocation4], %s223
        %s225 = sand.u32 %s85, 1
        %s226 = scalar_lea.vmem [#allocation3], %s225
        // Predicated region
        $region37: #{tpu_custom_call.1} parent=27 // pred_check
          %p227 = pneg %p95
        $region38: #{tpu_custom_call.1} parent=27 // pred_check_branch
          %229 = sbr.rel (%p227) target = $region40
        $region39: #{tpu_custom_call.1} parent=27 // pred_region
          %s231 = ssub.s32 16, 16
          %232 = vsyncadd %s224, %s231
          %s233 = smul.addr %s20, 16
          %s234 = scalar_lea.hbm %s2, %s233
          %s236 = sshll.u32 %s226, 4
          %s237 = int_to_ptr.vmem [resolvable:$true] %s236
          %239 = dma.vmem_to_hbm [thread:$0]  %s237, 16, %s234, %s224
        $region40: #{tpu_custom_call.1} parent=27 // pred_fallthru
          _
      $region28: #{tpu_custom_call.1} parent=5 // pred_fallthru
        _
      %p240 = scmp.le.s32.totalorder 2, %s11
      // Predicated region
      $region41: #{tpu_custom_call.1} parent=5 // pred_check
        %p241 = pneg %p240
      $region42: #{tpu_custom_call.1} parent=5 // pred_check_branch
        %243 = sbr.rel (%p241) target = $region44
      $region43: #{tpu_custom_call.1} parent=5 // pred_region
        %s244 = ssub.s32 %s11, 2
        // Predicated region
        $region45: #{tpu_custom_call.1} parent=43 // pred_check
          %p245 = pneg %p101
        $region46: #{tpu_custom_call.1} parent=43 // pred_check_branch
          %247 = sbr.rel (%p245) target = $region48
        $region47: #{tpu_custom_call.1} parent=43 // pred_region
          %s248 = sand.u32 %s86, 1
          %s249 = scalar_lea.sflag [#allocation4], %s248
          %s250 = sand.u32 %s86, 1
          %s251 = scalar_lea.vmem [#allocation3], %s250
          %252 = dma.done %s249, 16
        $region48: #{tpu_custom_call.1} parent=43 // pred_fallthru
          _
      $region44: #{tpu_custom_call.1} parent=5 // pred_fallthru
        _
    $region6: #{tpu_custom_call.1} parent=1 // loop_footer
      %s15 = sadd.s32 1, %s11
    $region7: #{tpu_custom_call.1} parent=1 // loop_footer_branch
      %10 = sbr.rel target = $region3
    $region8: #{tpu_custom_call.1} parent=1 // loop_exit
      _
    %253 = vsyncpa [#allocation4], 1
    %s254 = scalar_lea.sflag [#allocation4], 1
    %255 = vsyncpa %s254, 1

</llo_original>
